<compile_context>
chip_gen: v7x
topology: tpu7x:2x2x1
jax: 0.10.0
libtpu: 0.0.40
codegen_flags: <defaults>
</compile_context>

<pallas_src>
import functools
import math

import jax
import jax.numpy as jnp
from jax.experimental import pallas as pl
from jax.experimental.pallas import tpu as pltpu


def _round_up(x, m):
    return ((x + m - 1) // m) * m


def _ln_linear_kernel(x_ref, w_ref, b_ref, o_ref):
    """Fused LayerNorm (affine pre-folded into W/b) + Linear.

    x_ref: (TN, patch_dim)   merged-patch rows
    w_ref: (patch_dim, dim_pad)  gamma-folded, column-padded linear weight
    b_ref: (1, dim_pad)          beta-folded, padded linear bias
    o_ref: (TN, dim_pad)
    """
    x = x_ref[...].astype(jnp.float32)
    inv_pd = 1.0 / x.shape[-1]
    # One-pass mean / variance (var = E[x^2] - mean^2).
    s1 = jnp.sum(x, axis=-1, keepdims=True)
    s2 = jnp.sum(x * x, axis=-1, keepdims=True)
    mean = s1 * inv_pd
    var = s2 * inv_pd - mean * mean
    xn = (x - mean) * jax.lax.rsqrt(var + 1e-5)
    out = jnp.dot(xn, w_ref[...].astype(jnp.float32),
                  preferred_element_type=jnp.float32)
    o_ref[...] = (out + b_ref[...].astype(jnp.float32)).astype(o_ref.dtype)


def _patch_shift_rearrange(x, merging_size):
    """PatchShifting + Rearrange glue (fused by XLA under jit).

    x: (B, C, H, W) -> (B*h*w, p*p*5*C) with the same feature ordering as the
    PyTorch 'b c (h p1) (w p2) -> b (h w) (p1 p2 c)' applied to the 5-way concat.
    """
    B, C, H, W = x.shape
    p = merging_size
    s = p // 2
    h, w = H // p, W // p
    x_pad = jnp.pad(x, ((0, 0), (0, 0), (s, s), (s, s)))
    views = jnp.stack(
        [
            x,                                          # original
            x_pad[:, :, :H, :W],                        # left-up
            x_pad[:, :, :H, 2 * s:2 * s + W],           # right-up
            x_pad[:, :, 2 * s:2 * s + H, :W],           # left-bottom
            x_pad[:, :, 2 * s:2 * s + H, 2 * s:2 * s + W],  # right-bottom
        ],
        axis=1,
    )                                                   # (B, 5, C, H, W)
    xr = views.reshape(B, 5, C, h, p, w, p)             # b s c h p1 w p2
    xr = xr.transpose(0, 3, 5, 4, 6, 1, 2)              # b h w p1 p2 s c
    patch_dim = p * p * 5 * C
    return xr.reshape(B * h * w, patch_dim), h, w, patch_dim


@functools.partial(jax.jit, static_argnames=("merging_size", "tile_tokens"))
def shifted_patch_merging(x, ln_gamma, ln_beta, lin_w, lin_b,
                          merging_size=2, tile_tokens=None):
    """x: (B, C, H, W) NCHW -> (B, (H/p)*(W/p), dim)."""
    B, C, H, W = x.shape
    p = merging_size
    h, w = H // p, W // p
    dim = lin_w.shape[1]

    # --- glue: PatchShifting + Rearrange (pure indexing, fused by XLA) ---
    xr, h, w, patch_dim = _patch_shift_rearrange(x, p)
    N = B * h * w

    # --- fold LN affine into the linear; pad out-dim to a lane-dense width ---
    f32 = jnp.float32
    w_folded = ln_gamma.astype(f32)[:, None] * lin_w.astype(f32)   # (pd, dim)
    b_folded = ln_beta.astype(f32) @ lin_w.astype(f32) + lin_b.astype(f32)
    dim_pad = _round_up(dim, 128)
    if dim_pad != dim:
        w_folded = jnp.pad(w_folded, ((0, 0), (0, dim_pad - dim)))
        b_folded = jnp.pad(b_folded, (0, dim_pad - dim))
    b_folded = b_folded.reshape(1, dim_pad)

    # --- choose a large token tile under a conservative VMEM budget ---
    isz = x.dtype.itemsize
    if tile_tokens is None:
        budget = 24 * 1024 * 1024
        w_bytes = 2 * patch_dim * dim_pad * 4          # weight (double-buffered)
        per_row = 2 * (patch_dim * isz + dim_pad * isz)  # x + out, double-buffered
        cap = max(8, (budget - w_bytes) // per_row)
        cap = max(8, (cap // 8) * 8)
        tile_tokens = int(min(512, cap, _round_up(N, 8)))
        tile_tokens = max(8, (tile_tokens // 8) * 8)

    N_pad = _round_up(N, tile_tokens)
    if N_pad != N:
        # Zero rows normalize to zero (var=0 -> rsqrt(eps) finite) and are sliced off.
        xr = jnp.pad(xr, ((0, N_pad - N), (0, 0)))

    grid = (N_pad // tile_tokens,)
    out_padded = pl.pallas_call(
        _ln_linear_kernel,
        out_shape=jax.ShapeDtypeStruct((N_pad, dim_pad), x.dtype),
        grid=grid,
        in_specs=[
            pl.BlockSpec((tile_tokens, patch_dim), lambda i: (i, 0)),
            pl.BlockSpec((patch_dim, dim_pad), lambda i: (0, 0)),
            pl.BlockSpec((1, dim_pad), lambda i: (0, 0)),
        ],
        out_specs=pl.BlockSpec((tile_tokens, dim_pad), lambda i: (i, 0)),
        compiler_params=pltpu.CompilerParams(
            dimension_semantics=("parallel",),
            vmem_limit_bytes=32 * 1024 * 1024,
        ),
        cost_estimate=pl.CostEstimate(
            flops=2 * N_pad * patch_dim * dim_pad + 8 * N_pad * patch_dim,
            transcendentals=N_pad,
            bytes_accessed=(N_pad * patch_dim * isz
                            + patch_dim * dim_pad * 4
                            + N_pad * dim_pad * isz),
        ),
    )(xr, w_folded, b_folded)

    return out_padded[:N, :dim].reshape(B, h * w, dim)


def _reference(x, ln_gamma, ln_beta, lin_w, lin_b, merging_size=2):
    """Pure-JAX reference mirroring the PyTorch module (two-pass LN, no folding)."""
    B, C, H, W = x.shape
    p = merging_size
    s = p // 2
    s2 = 2 * s
    x_pad = jnp.pad(x, ((0, 0), (0, 0), (s, s), (s, s)))
    x_lu = x_pad[:, :, :-s2, :-s2]
    x_ru = x_pad[:, :, :-s2, s2:]
    x_lb = x_pad[:, :, s2:, :-s2]
    x_rb = x_pad[:, :, s2:, s2:]
    xc = jnp.concatenate([x, x_lu, x_ru, x_lb, x_rb], axis=1)   # (B, 5C, H, W)
    C5 = 5 * C
    h, w = H // p, W // p
    xr = xc.reshape(B, C5, h, p, w, p).transpose(0, 2, 4, 3, 5, 1)
    xr = xr.reshape(B, h * w, p * p * C5).astype(jnp.float32)
    mean = jnp.mean(xr, axis=-1, keepdims=True)
    var = jnp.mean((xr - mean) ** 2, axis=-1, keepdims=True)
    xn = (xr - mean) * jax.lax.rsqrt(var + 1e-5)
    y = xn * ln_gamma + ln_beta
    return jnp.dot(y, lin_w) + lin_b


if __name__ == "__main__":
    # Small shapes consistent with the module:
    #   in_dim=4 channels, spatial 16x16, merging_size=2, dim=32
    B, C, H, W = 2, 4, 16, 16
    merging_size = 2
    dim = 32
    patch_dim = C * 5 * merging_size ** 2  # 80

    key = jax.random.PRNGKey(0)
    kx, kg, kb, kw, kbias = jax.random.split(key, 5)

    x = jax.random.normal(kx, (B, C, H, W), dtype=jnp.float32)
    ln_gamma = 1.0 + 0.1 * jax.random.normal(kg, (patch_dim,), dtype=jnp.float32)
    ln_beta = 0.1 * jax.random.normal(kb, (patch_dim,), dtype=jnp.float32)
    lin_w = (jax.random.normal(kw, (patch_dim, dim), dtype=jnp.float32)
             / math.sqrt(patch_dim))
    lin_b = 0.1 * jax.random.normal(kbias, (dim,), dtype=jnp.float32)

    out = shifted_patch_merging(x, ln_gamma, ln_beta, lin_w, lin_b,
                                merging_size=merging_size)
    out = jax.block_until_ready(out)

    ref = _reference(x, ln_gamma, ln_beta, lin_w, lin_b, merging_size)
    assert out.shape == (B, (H // merging_size) * (W // merging_size), dim)
    assert jnp.allclose(out, ref, atol=1e-4, rtol=1e-4)

    print("KERNEL_OK")
</pallas_src>

<mosaic_0001>
module attributes {stable_mosaic.version = 11 : i64} {
  func.func @_ln_linear_kernel(%arg0: i32, %arg1: memref<128x80xf32, #tpu.memory_space<vmem>>, %arg2: memref<80x128xf32, #tpu.memory_space<vmem>>, %arg3: memref<1x128xf32, #tpu.memory_space<vmem>>, %arg4: memref<128x128xf32, #tpu.memory_space<vmem>>) attributes {dimension_semantics = [#tpu.dimension_semantics<parallel>], iteration_bounds = array<i64: 1>, scalar_prefetch = 0 : i64, scratch_operands = 0 : i64, tpu.core_type = #tpu.core_type<tc>, window_params = [{transform_indices = @transform_0, window_bounds = array<i64: 128, 80>}, {pipeline_mode = #tpu.pipeline_mode<synchronous>, transform_indices = @transform_1, window_bounds = array<i64: 80, 128>}, {pipeline_mode = #tpu.pipeline_mode<synchronous>, transform_indices = @transform_2, window_bounds = array<i64: 1, 128>}, {transform_indices = @transform_3, window_bounds = array<i64: 128, 128>}]} {
    %c0 = arith.constant 0 : index
    %c0_0 = arith.constant 0 : index
    %0 = vector.load %arg1[%c0, %c0_0] : memref<128x80xf32, #tpu.memory_space<vmem>>, vector<128x80xf32>
    %cst = arith.constant dense<0.000000e+00> : vector<128xf32>
    %1 = vector.multi_reduction <add>, %0, %cst [1] : vector<128x80xf32> to vector<128xf32>
    %2 = vector.shape_cast %1 : vector<128xf32> to vector<128x1xf32>
    %3 = arith.mulf %0, %0 : vector<128x80xf32>
    %cst_1 = arith.constant dense<0.000000e+00> : vector<128xf32>
    %4 = vector.multi_reduction <add>, %3, %cst_1 [1] : vector<128x80xf32> to vector<128xf32>
    %5 = vector.shape_cast %4 : vector<128xf32> to vector<128x1xf32>
    %cst_2 = arith.constant 1.250000e-02 : f32
    %6 = vector.broadcast %cst_2 : f32 to vector<128x1xf32>
    %7 = arith.mulf %2, %6 : vector<128x1xf32>
    %cst_3 = arith.constant 1.250000e-02 : f32
    %8 = vector.broadcast %cst_3 : f32 to vector<128x1xf32>
    %9 = arith.mulf %5, %8 : vector<128x1xf32>
    %10 = arith.mulf %7, %7 : vector<128x1xf32>
    %11 = arith.subf %9, %10 : vector<128x1xf32>
    %12 = vector.broadcast %7 : vector<128x1xf32> to vector<128x80xf32>
    %13 = arith.subf %0, %12 : vector<128x80xf32>
    %cst_4 = arith.constant 9.99999974E-6 : f32
    %14 = vector.broadcast %cst_4 : f32 to vector<128x1xf32>
    %15 = arith.addf %11, %14 : vector<128x1xf32>
    %16 = math.rsqrt %15 : vector<128x1xf32>
    %17 = vector.broadcast %16 : vector<128x1xf32> to vector<128x80xf32>
    %18 = arith.mulf %13, %17 : vector<128x80xf32>
    %c0_5 = arith.constant 0 : index
    %c0_6 = arith.constant 0 : index
    %19 = vector.load %arg2[%c0_5, %c0_6] : memref<80x128xf32, #tpu.memory_space<vmem>>, vector<80x128xf32>
    %cst_7 = arith.constant dense<0.000000e+00> : vector<128x128xf32>
    %20 = tpu.matmul %18, %19, %cst_7 {dimension_numbers = #tpu.dot_dimension_numbers<[1], [0], [0], [1], [0, 0, 1, 1], [], []>} : vector<128x80xf32>, vector<80x128xf32>, vector<128x128xf32> -> vector<128x128xf32>
    %c0_8 = arith.constant 0 : index
    %c0_9 = arith.constant 0 : index
    %21 = vector.load %arg3[%c0_8, %c0_9] : memref<1x128xf32, #tpu.memory_space<vmem>>, vector<1x128xf32>
    %22 = vector.broadcast %21 : vector<1x128xf32> to vector<128x128xf32>
    %23 = arith.addf %20, %22 : vector<128x128xf32>
    %c0_10 = arith.constant 0 : index
    %c0_11 = arith.constant 0 : index
    %24 = vector.load %arg4[%c0_10, %c0_11] : memref<128x128xf32, #tpu.memory_space<vmem>>, vector<128x128xf32>
    tpu.vector_store %arg4[%c0_10, %c0_11], %23 {strides = array<i32>} : memref<128x128xf32, #tpu.memory_space<vmem>>, vector<128x128xf32>,
    return
  }
  func.func @transform_0(%arg0: i32) -> (i32, i32) {
    %c0_i32 = arith.constant 0 : i32
    %c0_i32_0 = arith.constant 0 : i32
    return %arg0, %c0_i32 : i32, i32
  }
  func.func @transform_1(%arg0: i32) -> (i32, i32) {
    %c0_i32 = arith.constant 0 : i32
    %c0_i32_0 = arith.constant 0 : i32
    %c0_i32_1 = arith.constant 0 : i32
    return %c0_i32, %c0_i32_0 : i32, i32
  }
  func.func @transform_2(%arg0: i32) -> (i32, i32) {
    %c0_i32 = arith.constant 0 : i32
    %c0_i32_0 = arith.constant 0 : i32
    %c0_i32_1 = arith.constant 0 : i32
    return %c0_i32, %c0_i32_0 : i32, i32
  }
  func.func @transform_3(%arg0: i32) -> (i32, i32) {
    %c0_i32 = arith.constant 0 : i32
    %c0_i32_0 = arith.constant 0 : i32
    return %arg0, %c0_i32 : i32, i32
  }
}

</mosaic_0001>

<llo_original>
// kernel: shifted_patch_merging.1
$region0: #{shifted_patch_merging.1}
  #allocation0 [shape = 'u32[]', space=smem, size = 0x4, offset = 0x4, fixed_abs, tag = 'smem constant byte address 0x4 - core index']
  #allocation1 [shape = 'u32[144,128]{1,0:T(1,128)}', space=vmem, size = 0x12000, scoped, tag = 'internal scratch']
  %s0 = inlined_call_operand.vmem [shape: f32[128,80], index: 0, kind: input, shape index: {}]
  %s1 = inlined_call_operand.vmem [shape: f32[80,128], index: 1, kind: input, shape index: {}]
  %s2 = inlined_call_operand.vmem [shape: f32[1,128], index: 2, kind: input, shape index: {}]
  %s3 = inlined_call_operand.vmem [shape: f32[128,128], index: 3, kind: output, shape index: {}]
  %s4 = sld [smem:[#allocation0]]
  $region22: #{shifted_patch_merging.1} parent=0
    _
  %s6 = ssub.s32 1, %s4
  %s7 = scalar_select 0, %s6, %s4
  // Predicated region
  $region2: #{shifted_patch_merging.1} parent=0 // pred_check
    _
  $region3: #{shifted_patch_merging.1} parent=0 // pred_check_branch
    %9 = sbr.rel (0) target = $region5
  $region4: #{shifted_patch_merging.1} parent=0 // pred_region
    _
  $region5: #{shifted_patch_merging.1} parent=0 // pred_fallthru
    _
  // Predicated region
  $region6: #{shifted_patch_merging.1} parent=0 // pred_check
    _
  $region7: #{shifted_patch_merging.1} parent=0 // pred_check_branch
    %11 = sbr.rel (0) target = $region9
  $region8: #{shifted_patch_merging.1} parent=0 // pred_region
    _
  $region9: #{shifted_patch_merging.1} parent=0 // pred_fallthru
    _
  // Predicated region
  $region10: #{shifted_patch_merging.1} parent=0 // pred_check
    _
  $region11: #{shifted_patch_merging.1} parent=0 // pred_check_branch
    %13 = sbr.rel (0) target = $region13
  $region12: #{shifted_patch_merging.1} parent=0 // pred_region
    _
  $region13: #{shifted_patch_merging.1} parent=0 // pred_fallthru
    _
  %v14 = vld [vmem:[%s0] sm:$0xff]
  %v15 = vld [vmem:[%s0 + $0x8] sm:$0xff]
  %v16 = vld [vmem:[%s0 + $0x10] sm:$0xff]
  %v17 = vld [vmem:[%s0 + $0x18] sm:$0xff]
  %v18 = vld [vmem:[%s0 + $0x20] sm:$0xff]
  %v19 = vld [vmem:[%s0 + $0x28] sm:$0xff]
  %v20 = vld [vmem:[%s0 + $0x30] sm:$0xff]
  %v21 = vld [vmem:[%s0 + $0x38] sm:$0xff]
  %v22 = vld [vmem:[%s0 + $0x40] sm:$0xff]
  %v23 = vld [vmem:[%s0 + $0x48] sm:$0xff]
  %v24 = vld [vmem:[%s0 + $0x50] sm:$0xff]
  %v25 = vld [vmem:[%s0 + $0x58] sm:$0xff]
  %v26 = vld [vmem:[%s0 + $0x60] sm:$0xff]
  %v27 = vld [vmem:[%s0 + $0x68] sm:$0xff]
  %v28 = vld [vmem:[%s0 + $0x70] sm:$0xff]
  %v29 = vld [vmem:[%s0 + $0x78] sm:$0xff]
  %vm30 = vcmask 654336
  %v31 = vsel %vm30, %v14, 0.0
  %32 = vadd.xlane.f32.xlu0 %v31
  %v33 = vpop.xlane.xlu0 %32
  %v34 = vsel %vm30, %v15, 0.0
  %35 = vadd.xlane.f32.xlu0 %v34
  %v36 = vpop.xlane.xlu0 %35
  %v37 = vsel %vm30, %v16, 0.0
  %38 = vadd.xlane.f32.xlu0 %v37
  %v39 = vpop.xlane.xlu0 %38
  %v40 = vsel %vm30, %v17, 0.0
  %41 = vadd.xlane.f32.xlu0 %v40
  %v42 = vpop.xlane.xlu0 %41
  %v43 = vsel %vm30, %v18, 0.0
  %44 = vadd.xlane.f32.xlu0 %v43
  %v45 = vpop.xlane.xlu0 %44
  %v46 = vsel %vm30, %v19, 0.0
  %47 = vadd.xlane.f32.xlu0 %v46
  %v48 = vpop.xlane.xlu0 %47
  %v49 = vsel %vm30, %v20, 0.0
  %50 = vadd.xlane.f32.xlu0 %v49
  %v51 = vpop.xlane.xlu0 %50
  %v52 = vsel %vm30, %v21, 0.0
  %53 = vadd.xlane.f32.xlu0 %v52
  %v54 = vpop.xlane.xlu0 %53
  %v55 = vsel %vm30, %v22, 0.0
  %56 = vadd.xlane.f32.xlu0 %v55
  %v57 = vpop.xlane.xlu0 %56
  %v58 = vsel %vm30, %v23, 0.0
  %59 = vadd.xlane.f32.xlu0 %v58
  %v60 = vpop.xlane.xlu0 %59
  %v61 = vsel %vm30, %v24, 0.0
  %62 = vadd.xlane.f32.xlu0 %v61
  %v63 = vpop.xlane.xlu0 %62
  %v64 = vsel %vm30, %v25, 0.0
  %65 = vadd.xlane.f32.xlu0 %v64
  %v66 = vpop.xlane.xlu0 %65
  %v67 = vsel %vm30, %v26, 0.0
  %68 = vadd.xlane.f32.xlu0 %v67
  %v69 = vpop.xlane.xlu0 %68
  %v70 = vsel %vm30, %v27, 0.0
  %71 = vadd.xlane.f32.xlu0 %v70
  %v72 = vpop.xlane.xlu0 %71
  %v73 = vsel %vm30, %v28, 0.0
  %74 = vadd.xlane.f32.xlu0 %v73
  %v75 = vpop.xlane.xlu0 %74
  %v76 = vsel %vm30, %v29, 0.0
  %77 = vadd.xlane.f32.xlu0 %v76
  %v78 = vpop.xlane.xlu0 %77
  %v79 = vmul.f32 %v14, %v14
  %v80 = vmul.f32 %v15, %v15
  %v81 = vmul.f32 %v16, %v16
  %v82 = vmul.f32 %v17, %v17
  %v83 = vmul.f32 %v18, %v18
  %v84 = vmul.f32 %v19, %v19
  %v85 = vmul.f32 %v20, %v20
  %v86 = vmul.f32 %v21, %v21
  %v87 = vmul.f32 %v22, %v22
  %v88 = vmul.f32 %v23, %v23
  %v89 = vmul.f32 %v24, %v24
  %v90 = vmul.f32 %v25, %v25
  %v91 = vmul.f32 %v26, %v26
  %v92 = vmul.f32 %v27, %v27
  %v93 = vmul.f32 %v28, %v28
  %v94 = vmul.f32 %v29, %v29
  %v95 = vsel %vm30, %v79, 0.0
  %96 = vadd.xlane.f32.xlu0 %v95
  %v97 = vpop.xlane.xlu0 %96
  %v98 = vsel %vm30, %v80, 0.0
  %99 = vadd.xlane.f32.xlu0 %v98
  %v100 = vpop.xlane.xlu0 %99
  %v101 = vsel %vm30, %v81, 0.0
  %102 = vadd.xlane.f32.xlu0 %v101
  %v103 = vpop.xlane.xlu0 %102
  %v104 = vsel %vm30, %v82, 0.0
  %105 = vadd.xlane.f32.xlu0 %v104
  %v106 = vpop.xlane.xlu0 %105
  %v107 = vsel %vm30, %v83, 0.0
  %108 = vadd.xlane.f32.xlu0 %v107
  %v109 = vpop.xlane.xlu0 %108
  %v110 = vsel %vm30, %v84, 0.0
  %111 = vadd.xlane.f32.xlu0 %v110
  %v112 = vpop.xlane.xlu0 %111
  %v113 = vsel %vm30, %v85, 0.0
  %114 = vadd.xlane.f32.xlu0 %v113
  %v115 = vpop.xlane.xlu0 %114
  %v116 = vsel %vm30, %v86, 0.0
  %117 = vadd.xlane.f32.xlu0 %v116
  %v118 = vpop.xlane.xlu0 %117
  %v119 = vsel %vm30, %v87, 0.0
  %120 = vadd.xlane.f32.xlu0 %v119
  %v121 = vpop.xlane.xlu0 %120
  %v122 = vsel %vm30, %v88, 0.0
  %123 = vadd.xlane.f32.xlu0 %v122
  %v124 = vpop.xlane.xlu0 %123
  %v125 = vsel %vm30, %v89, 0.0
  %126 = vadd.xlane.f32.xlu0 %v125
  %v127 = vpop.xlane.xlu0 %126
  %v128 = vsel %vm30, %v90, 0.0
  %129 = vadd.xlane.f32.xlu0 %v128
  %v130 = vpop.xlane.xlu0 %129
  %v131 = vsel %vm30, %v91, 0.0
  %132 = vadd.xlane.f32.xlu0 %v131
  %v133 = vpop.xlane.xlu0 %132
  %v134 = vsel %vm30, %v92, 0.0
  %135 = vadd.xlane.f32.xlu0 %v134
  %v136 = vpop.xlane.xlu0 %135
  %v137 = vsel %vm30, %v93, 0.0
  %138 = vadd.xlane.f32.xlu0 %v137
  %v139 = vpop.xlane.xlu0 %138
  %v140 = vsel %vm30, %v94, 0.0
  %141 = vadd.xlane.f32.xlu0 %v140
  %v142 = vpop.xlane.xlu0 %141
  %v143 = vmul.f32 %v33, 0.0125
  %v144 = vmul.f32 %v36, 0.0125
  %v145 = vmul.f32 %v39, 0.0125
  %v146 = vmul.f32 %v42, 0.0125
  %v147 = vmul.f32 %v45, 0.0125
  %v148 = vmul.f32 %v48, 0.0125
  %v149 = vmul.f32 %v51, 0.0125
  %v150 = vmul.f32 %v54, 0.0125
  %v151 = vmul.f32 %v57, 0.0125
  %v152 = vmul.f32 %v60, 0.0125
  %v153 = vmul.f32 %v63, 0.0125
  %v154 = vmul.f32 %v66, 0.0125
  %v155 = vmul.f32 %v69, 0.0125
  %v156 = vmul.f32 %v72, 0.0125
  %v157 = vmul.f32 %v75, 0.0125
  %v158 = vmul.f32 %v78, 0.0125
  %v159 = vmul.f32 %v97, 0.0125
  %v160 = vmul.f32 %v100, 0.0125
  %v161 = vmul.f32 %v103, 0.0125
  %v162 = vmul.f32 %v106, 0.0125
  %v163 = vmul.f32 %v109, 0.0125
  %v164 = vmul.f32 %v112, 0.0125
  %v165 = vmul.f32 %v115, 0.0125
  %v166 = vmul.f32 %v118, 0.0125
  %v167 = vmul.f32 %v121, 0.0125
  %v168 = vmul.f32 %v124, 0.0125
  %v169 = vmul.f32 %v127, 0.0125
  %v170 = vmul.f32 %v130, 0.0125
  %v171 = vmul.f32 %v133, 0.0125
  %v172 = vmul.f32 %v136, 0.0125
  %v173 = vmul.f32 %v139, 0.0125
  %v174 = vmul.f32 %v142, 0.0125
  %v175 = vmul.f32 %v143, %v143
  %v176 = vmul.f32 %v144, %v144
  %v177 = vmul.f32 %v145, %v145
  %v178 = vmul.f32 %v146, %v146
  %v179 = vmul.f32 %v147, %v147
  %v180 = vmul.f32 %v148, %v148
  %v181 = vmul.f32 %v149, %v149
  %v182 = vmul.f32 %v150, %v150
  %v183 = vmul.f32 %v151, %v151
  %v184 = vmul.f32 %v152, %v152
  %v185 = vmul.f32 %v153, %v153
  %v186 = vmul.f32 %v154, %v154
  %v187 = vmul.f32 %v155, %v155
  %v188 = vmul.f32 %v156, %v156
  %v189 = vmul.f32 %v157, %v157
  %v190 = vmul.f32 %v158, %v158
  %v191 = vsub.f32 %v159, %v175
  %v192 = vsub.f32 %v160, %v176
  %v193 = vsub.f32 %v161, %v177
  %v194 = vsub.f32 %v162, %v178
  %v195 = vsub.f32 %v163, %v179
  %v196 = vsub.f32 %v164, %v180
  %v197 = vsub.f32 %v165, %v181
  %v198 = vsub.f32 %v166, %v182
  %v199 = vsub.f32 %v167, %v183
  %v200 = vsub.f32 %v168, %v184
  %v201 = vsub.f32 %v169, %v185
  %v202 = vsub.f32 %v170, %v186
  %v203 = vsub.f32 %v171, %v187
  %v204 = vsub.f32 %v172, %v188
  %v205 = vsub.f32 %v173, %v189
  %v206 = vsub.f32 %v174, %v190
  %v207 = vsub.f32 %v14, %v143
  %v208 = vsub.f32 %v15, %v144
  %v209 = vsub.f32 %v16, %v145
  %v210 = vsub.f32 %v17, %v146
  %v211 = vsub.f32 %v18, %v147
  %v212 = vsub.f32 %v19, %v148
  %v213 = vsub.f32 %v20, %v149
  %v214 = vsub.f32 %v21, %v150
  %v215 = vsub.f32 %v22, %v151
  %v216 = vsub.f32 %v23, %v152
  %v217 = vsub.f32 %v24, %v153
  %v218 = vsub.f32 %v25, %v154
  %v219 = vsub.f32 %v26, %v155
  %v220 = vsub.f32 %v27, %v156
  %v221 = vsub.f32 %v28, %v157
  %v222 = vsub.f32 %v29, %v158
  %v223 = vadd.f32 %v191, 1e-05
  %v224 = vadd.f32 %v192, 1e-05
  %v225 = vadd.f32 %v193, 1e-05
  %v226 = vadd.f32 %v194, 1e-05
  %v227 = vadd.f32 %v195, 1e-05
  %v228 = vadd.f32 %v196, 1e-05
  %v229 = vadd.f32 %v197, 1e-05
  %v230 = vadd.f32 %v198, 1e-05
  %v231 = vadd.f32 %v199, 1e-05
  %v232 = vadd.f32 %v200, 1e-05
  %v233 = vadd.f32 %v201, 1e-05
  %v234 = vadd.f32 %v202, 1e-05
  %v235 = vadd.f32 %v203, 1e-05
  %v236 = vadd.f32 %v204, 1e-05
  %v237 = vadd.f32 %v205, 1e-05
  %v238 = vadd.f32 %v206, 1e-05
  %v239 = vrsqrt.pop %v223
  %v240 = vrsqrt.pop %v224
  %v241 = vrsqrt.pop %v225
  %v242 = vrsqrt.pop %v226
  %v243 = vrsqrt.pop %v227
  %v244 = vrsqrt.pop %v228
  %v245 = vrsqrt.pop %v229
  %v246 = vrsqrt.pop %v230
  %v247 = vrsqrt.pop %v231
  %v248 = vrsqrt.pop %v232
  %v249 = vrsqrt.pop %v233
  %v250 = vrsqrt.pop %v234
  %v251 = vrsqrt.pop %v235
  %v252 = vrsqrt.pop %v236
  %v253 = vrsqrt.pop %v237
  %v254 = vrsqrt.pop %v238
  %v255 = vmul.f32 %v207, %v239
  %v256 = vmul.f32 %v208, %v240
  %v257 = vmul.f32 %v209, %v241
  %v258 = vmul.f32 %v210, %v242
  %v259 = vmul.f32 %v211, %v243
  %v260 = vmul.f32 %v212, %v244
  %v261 = vmul.f32 %v213, %v245
  %v262 = vmul.f32 %v214, %v246
  %v263 = vmul.f32 %v215, %v247
  %v264 = vmul.f32 %v216, %v248
  %v265 = vmul.f32 %v217, %v249
  %v266 = vmul.f32 %v218, %v250
  %v267 = vmul.f32 %v219, %v251
  %v268 = vmul.f32 %v220, %v252
  %v269 = vmul.f32 %v221, %v253
  %v270 = vmul.f32 %v222, %v254
  %v271 = vld [vmem:[%s1] sm:$0xff]
  %v272 = vld [vmem:[%s1 + $0x8] sm:$0xff]
  %v273 = vld [vmem:[%s1 + $0x10] sm:$0xff]
  %v274 = vld [vmem:[%s1 + $0x18] sm:$0xff]
  %v275 = vld [vmem:[%s1 + $0x20] sm:$0xff]
  %v276 = vld [vmem:[%s1 + $0x28] sm:$0xff]
  %v277 = vld [vmem:[%s1 + $0x30] sm:$0xff]
  %v278 = vld [vmem:[%s1 + $0x38] sm:$0xff]
  %v279 = vld [vmem:[%s1 + $0x40] sm:$0xff]
  %v280 = vld [vmem:[%s1 + $0x48] sm:$0xff]
  %v281 = vld [vmem:[%s2] sm:$0x1]
  %v283 = vlaneseq
  %v284 = vshrl.u32 %v283, 7
  %v285 = vsub.s32 0, %v284
  %v286 = vrot.slane %v281, %v285
  %v289 = vsel %vm30, %v255, 0
  %v292 = vsel %vm30, %v256, 0
  %v295 = vsel %vm30, %v257, 0
  %v298 = vsel %vm30, %v258, 0
  %v301 = vsel %vm30, %v259, 0
  %v304 = vsel %vm30, %v260, 0
  %v307 = vsel %vm30, %v261, 0
  %v310 = vsel %vm30, %v262, 0
  %v313 = vsel %vm30, %v263, 0
  %v316 = vsel %vm30, %v264, 0
  %v319 = vsel %vm30, %v265, 0
  %v322 = vsel %vm30, %v266, 0
  %v325 = vsel %vm30, %v267, 0
  %v328 = vsel %vm30, %v268, 0
  %v331 = vsel %vm30, %v269, 0
  %v334 = vsel %vm30, %v270, 0
  %336 = vmatprep.subr.mxu0 0.0
  %337 = vmatpush1.msra.mxu0 %v271
  %338 = vmatprep.subr.mxu0 0.0
  %339 = vmatpush1.msra.mxu0 %v272
  %340 = vmatprep.subr.mxu0 0.0
  %341 = vmatpush1.msra.mxu0 %v273
  %342 = vmatprep.subr.mxu0 0.0
  %343 = vmatpush1.msra.mxu0 %v274
  %344 = vmatprep.subr.mxu0 0.0
  %345 = vmatpush1.msra.mxu0 %v275
  %346 = vmatprep.subr.mxu0 0.0
  %347 = vmatpush1.msra.mxu0 %v276
  %348 = vmatprep.subr.mxu0 0.0
  %349 = vmatpush1.msra.mxu0 %v277
  %350 = vmatprep.subr.mxu0 0.0
  %351 = vmatpush1.msra.mxu0 %v278
  %352 = vmatprep.subr.mxu0 0.0
  %353 = vmatpush1.msra.mxu0 %v279
  %354 = vmatprep.subr.mxu0 0.0
  %355 = vmatpush1.msra.mxu0 %v280
  %356 = vmatprep.subr.mxu0 0.0
  %357 = vmatpush1.msra.mxu0 0.0
  %358 = vmatprep.subr.mxu0 0.0
  %359 = vmatpush1.msra.mxu0 0.0
  %360 = vmatprep.subr.mxu0 0.0
  %361 = vmatpush1.msra.mxu0 0.0
  %362 = vmatprep.subr.mxu0 0.0
  %363 = vmatpush1.msra.mxu0 0.0
  %364 = vmatprep.subr.mxu0 0.0
  %365 = vmatpush1.msra.mxu0 0.0
  %366 = vmatprep.subr.mxu0 0.0
  %367 = vmatpush1.msra.mxu0 0.0
  %368 = vmatprep.subr.mxu0 0.0
  %369 = vmatpush1.msra.mxu0 0.0
  %370 = vmatprep.subr.mxu0 0.0
  %371 = vmatpush1.msra.mxu0 0.0
  %372 = vmatprep.subr.mxu0 0.0
  %373 = vmatpush1.msra.mxu0 0.0
  %374 = vmatprep.subr.mxu0 0.0
  %375 = vmatpush1.msra.mxu0 0.0
  %376 = vmatprep.subr.mxu0 0.0
  %377 = vmatpush1.msra.mxu0 0.0
  %378 = vmatprep.subr.mxu0 0.0
  %379 = vmatpush1.msra.mxu0 0.0
  %380 = vmatprep.subr.mxu0 0.0
  %381 = vmatpush1.msra.mxu0 0.0
  %382 = vmatprep.subr.mxu0 0.0
  %383 = vmatpush1.msra.mxu0 0.0
  %384 = vmatprep.subr.mxu0 0.0
  %385 = vmatpush1.msra.mxu0 0.0
  %386 = vmatprep.subr.mxu0 0.0
  %387 = vmatpush1.msra.mxu0 0.0
  %388 = vmatprep.subr.mxu0 0.0
  %389 = vmatpush1.msra.mxu0 0.0
  %390 = vmatprep.subr.mxu0 0.0
  %391 = vmatpush1.msra.mxu0 0.0
  %392 = vmatprep.subr.mxu0 0.0
  %393 = vmatpush1.msra.mxu0 0.0
  %394 = vmatprep.subr.mxu0 0.0
  %395 = vmatpush1.msra.mxu0 0.0
  %396 = vmatprep.subr.mxu0 0.0
  %397 = vmatpush1.msra.mxu0 0.0
  %398 = vmatprep.subr.mxu0 0.0
  %399 = vmatpush1.msra.mxu0 0.0
  %400 = vmatprep.mubr.f32.mxu0 0.0
  %401 = vmatmul.mubr.f32.gmra.mrb[0].mxu0 %v289
  %v402 = vpop.f32.mrb[0].mxu0
  %v403 = vadd.f32 %v286, %v402
  %v404 = vpop.f32.mrb[0].mxu0
  %405 = vmatprep.mubr.f32.mxu0 0.0
  %406 = vmatmul.mubr.f32.gmra.mrb[0].mxu0 %v292
  %v407 = vpop.f32.mrb[0].mxu0
  %v408 = vadd.f32 %v286, %v407
  %v409 = vpop.f32.mrb[0].mxu0
  %410 = vmatprep.mubr.f32.mxu0 0.0
  %411 = vmatmul.mubr.f32.gmra.mrb[0].mxu0 %v295
  %v412 = vpop.f32.mrb[0].mxu0
  %v413 = vadd.f32 %v286, %v412
  %v414 = vpop.f32.mrb[0].mxu0
  %415 = vmatprep.mubr.f32.mxu0 0.0
  %416 = vmatmul.mubr.f32.gmra.mrb[0].mxu0 %v298
  %v417 = vpop.f32.mrb[0].mxu0
  %v418 = vadd.f32 %v286, %v417
  %v419 = vpop.f32.mrb[0].mxu0
  %420 = vmatprep.mubr.f32.mxu0 0.0
  %421 = vmatmul.mubr.f32.gmra.mrb[0].mxu0 %v301
  %v422 = vpop.f32.mrb[0].mxu0
  %v423 = vadd.f32 %v286, %v422
  %v424 = vpop.f32.mrb[0].mxu0
  %425 = vmatprep.mubr.f32.mxu0 0.0
  %426 = vmatmul.mubr.f32.gmra.mrb[0].mxu0 %v304
  %v427 = vpop.f32.mrb[0].mxu0
  %v428 = vadd.f32 %v286, %v427
  %v429 = vpop.f32.mrb[0].mxu0
  %430 = vmatprep.mubr.f32.mxu0 0.0
  %431 = vmatmul.mubr.f32.gmra.mrb[0].mxu0 %v307
  %v432 = vpop.f32.mrb[0].mxu0
  %v433 = vadd.f32 %v286, %v432
  %v434 = vpop.f32.mrb[0].mxu0
  %435 = vmatprep.mubr.f32.mxu0 0.0
  %436 = vmatmul.mubr.f32.gmra.mrb[0].mxu0 %v310
  %v437 = vpop.f32.mrb[0].mxu0
  %v438 = vadd.f32 %v286, %v437
  %v439 = vpop.f32.mrb[0].mxu0
  %440 = vmatprep.mubr.f32.mxu0 0.0
  %441 = vmatmul.mubr.f32.gmra.mrb[0].mxu0 %v313
  %v442 = vpop.f32.mrb[0].mxu0
  %v443 = vadd.f32 %v286, %v442
  %v444 = vpop.f32.mrb[0].mxu0
  %445 = vmatprep.mubr.f32.mxu0 0.0
  %446 = vmatmul.mubr.f32.gmra.mrb[0].mxu0 %v316
  %v447 = vpop.f32.mrb[0].mxu0
  %v448 = vadd.f32 %v286, %v447
  %v449 = vpop.f32.mrb[0].mxu0
  %450 = vmatprep.mubr.f32.mxu0 0.0
  %451 = vmatmul.mubr.f32.gmra.mrb[0].mxu0 %v319
  %v452 = vpop.f32.mrb[0].mxu0
  %v453 = vadd.f32 %v286, %v452
  %v454 = vpop.f32.mrb[0].mxu0
  %455 = vmatprep.mubr.f32.mxu0 0.0
  %456 = vmatmul.mubr.f32.gmra.mrb[0].mxu0 %v322
  %v457 = vpop.f32.mrb[0].mxu0
  %v458 = vadd.f32 %v286, %v457
  %v459 = vpop.f32.mrb[0].mxu0
  %460 = vmatprep.mubr.f32.mxu0 0.0
  %461 = vmatmul.mubr.f32.gmra.mrb[0].mxu0 %v325
  %v462 = vpop.f32.mrb[0].mxu0
  %v463 = vadd.f32 %v286, %v462
  %v464 = vpop.f32.mrb[0].mxu0
  %465 = vmatprep.mubr.f32.mxu0 0.0
  %466 = vmatmul.mubr.f32.gmra.mrb[0].mxu0 %v328
  %v467 = vpop.f32.mrb[0].mxu0
  %v468 = vadd.f32 %v286, %v467
  %v469 = vpop.f32.mrb[0].mxu0
  %470 = vmatprep.mubr.f32.mxu0 0.0
  %471 = vmatmul.mubr.f32.gmra.mrb[0].mxu0 %v331
  %v472 = vpop.f32.mrb[0].mxu0
  %v473 = vadd.f32 %v286, %v472
  %v474 = vpop.f32.mrb[0].mxu0
  %475 = vmatprep.mubr.f32.mxu0 0.0
  %476 = vmatmul.mubr.f32.gmra.mrb[0].mxu0 %v334
  %v477 = vpop.f32.mrb[0].mxu0
  %v478 = vadd.f32 %v286, %v477
  %v479 = vpop.f32.mrb[0].mxu0
  %480 = vdwg.mxu0
  %481 = vst [vmem:[%s3] sm:$0xff] %v403
  %482 = vst [vmem:[%s3 + $0x8] sm:$0xff] %v408
  %483 = vst [vmem:[%s3 + $0x10] sm:$0xff] %v413
  %484 = vst [vmem:[%s3 + $0x18] sm:$0xff] %v418
  %485 = vst [vmem:[%s3 + $0x20] sm:$0xff] %v423
  %486 = vst [vmem:[%s3 + $0x28] sm:$0xff] %v428
  %487 = vst [vmem:[%s3 + $0x30] sm:$0xff] %v433
  %488 = vst [vmem:[%s3 + $0x38] sm:$0xff] %v438
  %489 = vst [vmem:[%s3 + $0x40] sm:$0xff] %v443
  %490 = vst [vmem:[%s3 + $0x48] sm:$0xff] %v448
  %491 = vst [vmem:[%s3 + $0x50] sm:$0xff] %v453
  %492 = vst [vmem:[%s3 + $0x58] sm:$0xff] %v458
  %493 = vst [vmem:[%s3 + $0x60] sm:$0xff] %v463
  %494 = vst [vmem:[%s3 + $0x68] sm:$0xff] %v468
  %495 = vst [vmem:[%s3 + $0x70] sm:$0xff] %v473
  %496 = vst [vmem:[%s3 + $0x78] sm:$0xff] %v478
  // Predicated region
  $region14: #{shifted_patch_merging.1} parent=0 // pred_check
    _
  $region15: #{shifted_patch_merging.1} parent=0 // pred_check_branch
    %498 = sbr.rel (0) target = $region17
  $region16: #{shifted_patch_merging.1} parent=0 // pred_region
    _
  $region17: #{shifted_patch_merging.1} parent=0 // pred_fallthru
    _
  // Predicated region
  $region18: #{shifted_patch_merging.1} parent=0 // pred_check
    _
  $region19: #{shifted_patch_merging.1} parent=0 // pred_check_branch
    %500 = sbr.rel (0) target = $region21
  $region20: #{shifted_patch_merging.1} parent=0 // pred_region
    _
  $region21: #{shifted_patch_merging.1} parent=0 // pred_fallthru
    _

</llo_original>
